<compile_context>
chip_gen: v7x
topology: tpu7x:2x2x1
jax: 0.10.0
libtpu: 0.0.40
codegen_flags: <defaults>
</compile_context>

<pallas_src>
from functools import partial

import jax
import jax.numpy as jnp
from jax.experimental import pallas as pl
from jax.experimental.pallas import tpu as pltpu


def patch_expansion_kernel(x_ref, wexpc_ref, segavg_ref, bc_ref, wbd_ref,
                           bias_ref, o_ref, *, eps):
    """One row tile of flattened spatial positions (lane axis = channels).

    x_ref:      (tm, C)        NHWC rows
    wexpc_ref:  (C, s2*C)      expand weight with per-segment mean removal folded in
    segavg_ref: (s2*C, s2)     per-segment variance-averaging matrix (1/C blocks)
    bc_ref:     (s2, s2*IC)    segment -> output-lane broadcast matrix (0/1 blocks)
    wbd_ref:    (s2*C, s2*IC)  block-diagonal (gamma * 1x1-conv) weight
    bias_ref:   (1, s2*IC)     beta folded through the 1x1 conv (f32)
    o_ref:      (tm, s2*IC)
    """
    # expand + per-segment mean removal in ONE matmul            [MXU, 1 pass]
    centered = jnp.dot(x_ref[...], wexpc_ref[...],
                       preferred_element_type=jnp.float32)       # (tm, s2*C) f32

    # grouped LayerNorm variance, kept narrow at (tm, s2)        [VPU + MXU]
    var = jnp.dot(centered * centered, segavg_ref[...],
                  preferred_element_type=jnp.float32)            # (tm, s2)
    inv_std = jax.lax.rsqrt(var + eps)                           # (tm, s2)  [EUP]

    # LayerNorm gamma + 1x1 conv folded into one block-diagonal matmul [MXU]
    conv = jnp.dot(centered.astype(wbd_ref.dtype), wbd_ref[...],
                   preferred_element_type=jnp.float32)           # (tm, s2*IC)

    # broadcast inv_std to the s2*IC output lanes (tiny matmul), then finish
    inv_bc = jnp.dot(inv_std, bc_ref[...],
                     preferred_element_type=jnp.float32)         # (tm, s2*IC)
    o_ref[...] = (conv * inv_bc + bias_ref[...]).astype(o_ref.dtype)


def _pick_tm(n_rows, tm_max):
    """Pick a row tile: multiple of 8, <= tm_max.

    Preference order (v7x megacore / pipelining feedback):
      1) exact divisor of n_rows with an EVEN number of grid steps,
      2) any exact divisor,
      3) padded tail with an even number of steps.
    The tile is also capped so we get >= 4 grid steps when the row count
    allows (2 TensorCores x >= 2 steps each for DMA/compute overlap)."""
    cap = max(8, (min(tm_max, n_rows) // 8) * 8)
    if n_rows >= 32:
        cap = min(cap, max(8, (n_rows // 4) // 8 * 8))
    # 1) exact divisor, even step count
    for tm in range(cap, 7, -8):
        if n_rows % tm == 0 and (n_rows // tm) % 2 == 0:
            return tm, 0
    # 2) exact divisor
    for tm in range(cap, 7, -8):
        if n_rows % tm == 0:
            return tm, 0
    # 3) padded tail, even step count
    steps = -(-n_rows // cap)
    steps += steps % 2
    return cap, steps * cap - n_rows


def patch_expansion(x_nhwc, w_expand, gamma, beta, w_conv, *, dim_scale,
                    tm=1024, eps=1e-5, vmem_limit_bytes=32 * 1024 * 1024,
                    output_format="nchw"):
    """x_nhwc: (B, H, W, C). Returns NCHW (B, img_channels, H*s, W*s) by default.

    * Pass bf16 activations for the bf16 MXU path on v6e/v7x (weights for the
      two large matmuls are then stored in bf16; LayerNorm stats stay f32).
    * On v7x keep tm <= ~2048-4096 (64 MiB physical VMEM); the 1024 default is
      safe on all generations with the 32 MiB scoped-VMEM budget used here.
    * output_format="rows" returns (B, H, W, s, s, IC) and skips the full
      NCHW transpose (which costs roughly as much HBM traffic as the kernel).
    """
    B, H, W, C = x_nhwc.shape
    s = dim_scale
    s2 = s * s
    IC = w_conv.shape[0]
    N = B * H * W
    f32 = jnp.float32

    tm, pad = _pick_tm(N, tm)
    x_flat = x_nhwc.reshape(N, C)
    if pad:
        x_flat = jnp.pad(x_flat, ((0, pad), (0, 0)))
    Np = N + pad

    # dtype for the two large MXU matmul weights: follow the activation dtype
    mm_dtype = jnp.bfloat16 if x_nhwc.dtype == jnp.bfloat16 else f32

    # --- fold the module weights into lane-layout-friendly operands (f32) ---
    w_exp_t = jnp.transpose(w_expand).astype(f32)               # (C, s2*C)
    w_conv_2d = w_conv.reshape(IC, C).astype(f32)               # (IC, C)

    # mean removal folded into the expand weight (exact: mean is linear in x):
    #   W_exp_centered[:, seg*C + c] = W^T[:, seg*C + c] - mean_c'(W^T[:, seg*C + c'])
    w3 = w_exp_t.reshape(C, s2, C)
    w_expc = (w3 - w3.mean(axis=-1, keepdims=True)).reshape(C, s2 * C)
    w_expc = w_expc.astype(mm_dtype)                            # (C, s2*C)

    # per-segment variance-averaging matrix (stats stay f32)
    seg_avg = jnp.kron(jnp.eye(s2, dtype=f32),
                       jnp.full((C, 1), 1.0 / C, dtype=f32))    # (s2*C, s2)
    # segment -> output-lane broadcast for inv_std
    bc = jnp.kron(jnp.eye(s2, dtype=f32),
                  jnp.ones((1, IC), dtype=f32))                 # (s2, s2*IC)

    # gamma folded into a block-diagonal 1x1-conv weight; beta folded into bias
    blk = gamma.astype(f32)[:, None] * jnp.transpose(w_conv_2d)    # (C, IC)
    w_bd = jnp.kron(jnp.eye(s2, dtype=f32), blk).astype(mm_dtype)  # (s2*C, s2*IC)
    bias = jnp.tile(beta.astype(f32) @ jnp.transpose(w_conv_2d),
                    (s2,)).reshape(1, s2 * IC)                     # (1, s2*IC)

    kernel = partial(patch_expansion_kernel, eps=eps)

    out_flat = pl.pallas_call(
        kernel,
        out_shape=jax.ShapeDtypeStruct((Np, s2 * IC), x_nhwc.dtype),
        grid_spec=pltpu.PrefetchScalarGridSpec(
            num_scalar_prefetch=0,
            grid=(Np // tm,),
            in_specs=[
                pl.BlockSpec((tm, C), lambda i: (i, 0)),             # x rows
                pl.BlockSpec((C, s2 * C), lambda i: (0, 0)),         # expand+center W
                pl.BlockSpec((s2 * C, s2), lambda i: (0, 0)),        # seg var-avg
                pl.BlockSpec((s2, s2 * IC), lambda i: (0, 0)),       # inv_std bcast
                pl.BlockSpec((s2 * C, s2 * IC), lambda i: (0, 0)),   # conv (block-diag)
                pl.BlockSpec((1, s2 * IC), lambda i: (0, 0)),        # bias
            ],
            out_specs=pl.BlockSpec((tm, s2 * IC), lambda i: (i, 0)),
        ),
        compiler_params=pltpu.CompilerParams(
            dimension_semantics=("parallel",),
            vmem_limit_bytes=vmem_limit_bytes),
    )(x_flat, w_expc, seg_avg, bc, w_bd, bias)

    if pad:
        out_flat = out_flat[:N]

    # rows (b,h,w) x lanes (p1,p2,ic)
    out = out_flat.reshape(B, H, W, s, s, IC)
    if output_format == "rows":
        return out                                   # no post-kernel transpose
    # NCHW to match the PyTorch module: (h*s+p1, w*s+p2) pixels, channel-major.
    # This transpose is wrapper-side layout plumbing; fuse into the consumer
    # (or use output_format="rows") to avoid the extra output-sized HBM pass.
    out = out.transpose(0, 5, 1, 3, 2, 4)            # (B, IC, H, p1, W, p2)
    return out.reshape(B, IC, H * s, W * s)


def patch_expansion_reference(x_nhwc, w_expand, gamma, beta, w_conv, *,
                              dim_scale, eps=1e-5):
    """Pure-JAX reference mirroring the PyTorch forward."""
    B, H, W, C = x_nhwc.shape
    s = dim_scale
    IC = w_conv.shape[0]
    y = jnp.einsum('bhwc,oc->bhwo', x_nhwc, w_expand)          # (B,H,W,s^2*C)
    y = y.reshape(B, H, W, s, s, C)
    y = y.transpose(0, 1, 3, 2, 4, 5).reshape(B, H * s, W * s, C)
    mean = y.mean(-1, keepdims=True)
    var = ((y - mean) ** 2).mean(-1, keepdims=True)
    yn = (y - mean) / jnp.sqrt(var + eps) * gamma + beta
    out = jnp.einsum('bhwc,oc->bohw', yn, w_conv.reshape(IC, C))
    return out


if __name__ == "__main__":
    # Small deterministic config: dim_scale=2, channel_dim=32, img_channels=4
    B, H, W = 2, 8, 8
    channel_dim = 32
    dim_scale = 2
    img_channels = 4
    s2 = dim_scale * dim_scale

    key = jax.random.PRNGKey(0)
    kx, kw1, kw2, kg, kb = jax.random.split(key, 5)

    x = jax.random.normal(kx, (B, H, W, channel_dim), dtype=jnp.float32)
    # nn.Linear(channel_dim, s^2*channel_dim, bias=False): weight (out, in)
    w_expand = 0.02 * jax.random.normal(
        kw1, (s2 * channel_dim, channel_dim), dtype=jnp.float32)
    # nn.LayerNorm(channel_dim) affine params (synthetic, deterministic)
    gamma = 1.0 + 0.1 * jax.random.normal(kg, (channel_dim,), dtype=jnp.float32)
    beta = 0.1 * jax.random.normal(kb, (channel_dim,), dtype=jnp.float32)
    # nn.Conv2d(channel_dim, img_channels, 1, bias=False): weight (out, in, 1, 1)
    w_conv = 0.05 * jax.random.normal(
        kw2, (img_channels, channel_dim, 1, 1), dtype=jnp.float32)

    out = patch_expansion(x, w_expand, gamma, beta, w_conv,
                          dim_scale=dim_scale)
    out = jax.block_until_ready(out)

    ref = patch_expansion_reference(x, w_expand, gamma, beta, w_conv,
                                    dim_scale=dim_scale)
    assert out.shape == (B, img_channels, H * dim_scale, W * dim_scale)
    assert jnp.allclose(out, ref, atol=2e-4, rtol=2e-4), "mismatch vs reference"

    print("KERNEL_OK")
</pallas_src>

<mosaic_0001>
module attributes {stable_mosaic.version = 11 : i64} {
  func.func @patch_expansion_kernel(%arg0: i32, %arg1: memref<32x32xf32, #tpu.memory_space<vmem>>, %arg2: memref<32x128xf32, #tpu.memory_space<vmem>>, %arg3: memref<128x4xf32, #tpu.memory_space<vmem>>, %arg4: memref<4x16xf32, #tpu.memory_space<vmem>>, %arg5: memref<128x16xf32, #tpu.memory_space<vmem>>, %arg6: memref<1x16xf32, #tpu.memory_space<vmem>>, %arg7: memref<32x16xf32, #tpu.memory_space<vmem>>) attributes {dimension_semantics = [#tpu.dimension_semantics<parallel>], iteration_bounds = array<i64: 4>, scalar_prefetch = 0 : i64, scratch_operands = 0 : i64, tpu.core_type = #tpu.core_type<tc>, window_params = [{transform_indices = @transform_0, window_bounds = array<i64: 32, 32>}, {pipeline_mode = #tpu.pipeline_mode<synchronous>, transform_indices = @transform_1, window_bounds = array<i64: 32, 128>}, {pipeline_mode = #tpu.pipeline_mode<synchronous>, transform_indices = @transform_2, window_bounds = array<i64: 128, 4>}, {pipeline_mode = #tpu.pipeline_mode<synchronous>, transform_indices = @transform_3, window_bounds = array<i64: 4, 16>}, {pipeline_mode = #tpu.pipeline_mode<synchronous>, transform_indices = @transform_4, window_bounds = array<i64: 128, 16>}, {pipeline_mode = #tpu.pipeline_mode<synchronous>, transform_indices = @transform_5, window_bounds = array<i64: 1, 16>}, {transform_indices = @transform_6, window_bounds = array<i64: 32, 16>}]} {
    %c0 = arith.constant 0 : index
    %c0_0 = arith.constant 0 : index
    %0 = vector.load %arg1[%c0, %c0_0] : memref<32x32xf32, #tpu.memory_space<vmem>>, vector<32x32xf32>
    %c0_1 = arith.constant 0 : index
    %c0_2 = arith.constant 0 : index
    %1 = vector.load %arg2[%c0_1, %c0_2] : memref<32x128xf32, #tpu.memory_space<vmem>>, vector<32x128xf32>
    %cst = arith.constant dense<0.000000e+00> : vector<32x128xf32>
    %2 = tpu.matmul %0, %1, %cst {dimension_numbers = #tpu.dot_dimension_numbers<[1], [0], [0], [1], [0, 0, 1, 1], [], []>} : vector<32x32xf32>, vector<32x128xf32>, vector<32x128xf32> -> vector<32x128xf32>
    %3 = arith.mulf %2, %2 : vector<32x128xf32>
    %c0_3 = arith.constant 0 : index
    %c0_4 = arith.constant 0 : index
    %4 = vector.load %arg3[%c0_3, %c0_4] : memref<128x4xf32, #tpu.memory_space<vmem>>, vector<128x4xf32>
    %cst_5 = arith.constant dense<0.000000e+00> : vector<32x4xf32>
    %5 = tpu.matmul %3, %4, %cst_5 {dimension_numbers = #tpu.dot_dimension_numbers<[1], [0], [0], [1], [0, 0, 1, 1], [], []>} : vector<32x128xf32>, vector<128x4xf32>, vector<32x4xf32> -> vector<32x4xf32>
    %cst_6 = arith.constant 9.99999974E-6 : f32
    %6 = vector.broadcast %cst_6 : f32 to vector<32x4xf32>
    %7 = arith.addf %5, %6 : vector<32x4xf32>
    %8 = math.rsqrt %7 : vector<32x4xf32>
    %c0_7 = arith.constant 0 : index
    %c0_8 = arith.constant 0 : index
    %9 = vector.load %arg5[%c0_7, %c0_8] : memref<128x16xf32, #tpu.memory_space<vmem>>, vector<128x16xf32>
    %cst_9 = arith.constant dense<0.000000e+00> : vector<32x16xf32>
    %10 = tpu.matmul %2, %9, %cst_9 {dimension_numbers = #tpu.dot_dimension_numbers<[1], [0], [0], [1], [0, 0, 1, 1], [], []>} : vector<32x128xf32>, vector<128x16xf32>, vector<32x16xf32> -> vector<32x16xf32>
    %c0_10 = arith.constant 0 : index
    %c0_11 = arith.constant 0 : index
    %11 = vector.load %arg4[%c0_10, %c0_11] : memref<4x16xf32, #tpu.memory_space<vmem>>, vector<4x16xf32>
    %cst_12 = arith.constant dense<0.000000e+00> : vector<32x16xf32>
    %12 = tpu.matmul %8, %11, %cst_12 {dimension_numbers = #tpu.dot_dimension_numbers<[1], [0], [0], [1], [0, 0, 1, 1], [], []>} : vector<32x4xf32>, vector<4x16xf32>, vector<32x16xf32> -> vector<32x16xf32>
    %13 = arith.mulf %10, %12 : vector<32x16xf32>
    %c0_13 = arith.constant 0 : index
    %c0_14 = arith.constant 0 : index
    %14 = vector.load %arg6[%c0_13, %c0_14] : memref<1x16xf32, #tpu.memory_space<vmem>>, vector<1x16xf32>
    %15 = vector.broadcast %14 : vector<1x16xf32> to vector<32x16xf32>
    %16 = arith.addf %13, %15 : vector<32x16xf32>
    %c0_15 = arith.constant 0 : index
    %c0_16 = arith.constant 0 : index
    %17 = vector.load %arg7[%c0_15, %c0_16] : memref<32x16xf32, #tpu.memory_space<vmem>>, vector<32x16xf32>
    tpu.vector_store %arg7[%c0_15, %c0_16], %16 {strides = array<i32>} : memref<32x16xf32, #tpu.memory_space<vmem>>, vector<32x16xf32>,
    return
  }
  func.func @transform_0(%arg0: i32) -> (i32, i32) {
    %c0_i32 = arith.constant 0 : i32
    %c0_i32_0 = arith.constant 0 : i32
    return %arg0, %c0_i32 : i32, i32
  }
  func.func @transform_1(%arg0: i32) -> (i32, i32) {
    %c0_i32 = arith.constant 0 : i32
    %c0_i32_0 = arith.constant 0 : i32
    %c0_i32_1 = arith.constant 0 : i32
    return %c0_i32, %c0_i32_0 : i32, i32
  }
  func.func @transform_2(%arg0: i32) -> (i32, i32) {
    %c0_i32 = arith.constant 0 : i32
    %c0_i32_0 = arith.constant 0 : i32
    %c0_i32_1 = arith.constant 0 : i32
    return %c0_i32, %c0_i32_0 : i32, i32
  }
  func.func @transform_3(%arg0: i32) -> (i32, i32) {
    %c0_i32 = arith.constant 0 : i32
    %c0_i32_0 = arith.constant 0 : i32
    %c0_i32_1 = arith.constant 0 : i32
    return %c0_i32, %c0_i32_0 : i32, i32
  }
  func.func @transform_4(%arg0: i32) -> (i32, i32) {
    %c0_i32 = arith.constant 0 : i32
    %c0_i32_0 = arith.constant 0 : i32
    %c0_i32_1 = arith.constant 0 : i32
    return %c0_i32, %c0_i32_0 : i32, i32
  }
  func.func @transform_5(%arg0: i32) -> (i32, i32) {
    %c0_i32 = arith.constant 0 : i32
    %c0_i32_0 = arith.constant 0 : i32
    %c0_i32_1 = arith.constant 0 : i32
    return %c0_i32, %c0_i32_0 : i32, i32
  }
  func.func @transform_6(%arg0: i32) -> (i32, i32) {
    %c0_i32 = arith.constant 0 : i32
    %c0_i32_0 = arith.constant 0 : i32
    return %arg0, %c0_i32 : i32, i32
  }
}

</mosaic_0001>

<llo_original>
// kernel: tpu_custom_call.1
$region0: #{tpu_custom_call.1}
  #allocation0 [shape = 'u32[]', space=smem, size = 0x4, offset = 0x4, fixed_abs, tag = 'smem constant byte address 0x4 - core index']
  #allocation1 [shape = 'u32[144,128]{1,0:T(1,128)}', space=vmem, size = 0x12000, scoped, tag = 'internal scratch']
  %s0 = inlined_call_operand.vmem [shape: f32[128,32], index: 0, kind: input, shape index: {}]
  %s1 = inlined_call_operand.vmem [shape: f32[32,128], index: 1, kind: input, shape index: {}]
  %s2 = inlined_call_operand.vmem [shape: f32[128,4], index: 2, kind: input, shape index: {}]
  %s3 = inlined_call_operand.vmem [shape: f32[4,16], index: 3, kind: input, shape index: {}]
  %s4 = inlined_call_operand.vmem [shape: f32[128,16], index: 4, kind: input, shape index: {}]
  %s5 = inlined_call_operand.vmem [shape: f32[1,16], index: 5, kind: input, shape index: {}]
  %s6 = inlined_call_operand.vmem [shape: f32[128,16], index: 6, kind: output, shape index: {}]
  %s7 = sld [smem:[#allocation0]]
  $region57: #{tpu_custom_call.1} parent=0
    _
  %s9 = ssub.s32 1, %s7
  %s10 = scalar_select 0, %s9, %s7
  loop: start=0, step=1, limit=6
  $region2: #{tpu_custom_call.1} parent=0 // loop_pre_header
    _
  $region3: #{tpu_custom_call.1} parent=0 // loop_header
    %s12 = sphi 0, %s16
    %p13 = scmp.ge.s32.totalorder %s12, 6
    %s22 = sphi 0, %s24
    %s25 = sphi 0, %s22
    %s26 = sphi 0, %s25
    %s42 = sphi 0, %s26
    %s46 = sphi 0, %s46
    %s48 = sphi 0, %s46
    %s49 = sphi 0, %s48
    %s63 = sphi 0, %s49
    %s67 = sphi 0, %s67
    %s69 = sphi 0, %s67
    %s70 = sphi 0, %s69
    %s84 = sphi 0, %s70
    %s88 = sphi 0, %s88
    %s90 = sphi 0, %s88
    %s91 = sphi 0, %s90
    %s105 = sphi 0, %s91
    %s109 = sphi 0, %s109
    %s111 = sphi 0, %s109
    %s112 = sphi 0, %s111
    %s126 = sphi 0, %s112
    %s130 = sphi 0, %s130
    %s132 = sphi 0, %s130
    %s133 = sphi 0, %s132
    %s147 = sphi 0, %s133
    %s153 = sphi 0, %s155
    %s156 = sphi 0, %s153
    %s157 = sphi 0, %s156
    %s173 = sphi 0, %s157
  $region4: #{tpu_custom_call.1} parent=0 // loop_header_branch
    %15 = sbr.rel (%p13) target = $region8
  $region5: #{tpu_custom_call.1} parent=0 // loop_body
    %s17 = ssub.s32 %s12, 1
    %s18 = ssub.s32 %s12, 2
    %s19 = sadd.s32 %s12, 1
    %s20 = ssub.s32 %s12, %s19
    %p21 = scmp.eq.s32.totalorder %s20, 0
    %s23 = sadd.s32 %s22, 1
    %s24 = scalar_select %p21, %s22, %s23
    %p27 = pneg %p21
    %p28 = scmp.eq.s32.totalorder %s12, 3
    %p29 = por %p27, %p28
    %p30 = scmp.ne.s32.totalorder %s22, %s25
    %p31 = scmp.eq.s32.totalorder %s12, 0
    %p32 = por %p30, %p31
    %p33 = scmp.ne.s32.totalorder %s22, %s25
    %p34 = scmp.eq.s32.totalorder %s17, 3
    %p35 = por %p33, %p34
    %p36 = scmp.ne.s32.totalorder %s25, %s26
    %p37 = scmp.eq.s32.totalorder %s17, 0
    %p38 = por %p36, %p37
    %p39 = scmp.ne.s32.totalorder %s25, %s26
    %p40 = scmp.eq.s32.totalorder %s18, 3
    %p41 = por %p39, %p40
    %p43 = scmp.ne.s32.totalorder %s26, %s42
    %p44 = scmp.eq.s32.totalorder %s18, 0
    %p45 = por %p43, %p44
    %s47 = sadd.s32 %s46, 1
    %p50 = scmp.eq.s32.totalorder %s12, 3
    %p51 = scmp.ne.s32.totalorder %s46, %s48
    %p52 = scmp.eq.s32.totalorder %s12, 0
    %p53 = por %p51, %p52
    %p54 = scmp.ne.s32.totalorder %s46, %s48
    %p55 = scmp.eq.s32.totalorder %s17, 3
    %p56 = por %p54, %p55
    %p57 = scmp.ne.s32.totalorder %s48, %s49
    %p58 = scmp.eq.s32.totalorder %s17, 0
    %p59 = por %p57, %p58
    %p60 = scmp.ne.s32.totalorder %s48, %s49
    %p61 = scmp.eq.s32.totalorder %s18, 3
    %p62 = por %p60, %p61
    %p64 = scmp.ne.s32.totalorder %s49, %s63
    %p65 = scmp.eq.s32.totalorder %s18, 0
    %p66 = por %p64, %p65
    %s68 = sadd.s32 %s67, 1
    %p71 = scmp.eq.s32.totalorder %s12, 3
    %p72 = scmp.ne.s32.totalorder %s67, %s69
    %p73 = scmp.eq.s32.totalorder %s12, 0
    %p74 = por %p72, %p73
    %p75 = scmp.ne.s32.totalorder %s67, %s69
    %p76 = scmp.eq.s32.totalorder %s17, 3
    %p77 = por %p75, %p76
    %p78 = scmp.ne.s32.totalorder %s69, %s70
    %p79 = scmp.eq.s32.totalorder %s17, 0
    %p80 = por %p78, %p79
    %p81 = scmp.ne.s32.totalorder %s69, %s70
    %p82 = scmp.eq.s32.totalorder %s18, 3
    %p83 = por %p81, %p82
    %p85 = scmp.ne.s32.totalorder %s70, %s84
    %p86 = scmp.eq.s32.totalorder %s18, 0
    %p87 = por %p85, %p86
    %s89 = sadd.s32 %s88, 1
    %p92 = scmp.eq.s32.totalorder %s12, 3
    %p93 = scmp.ne.s32.totalorder %s88, %s90
    %p94 = scmp.eq.s32.totalorder %s12, 0
    %p95 = por %p93, %p94
    %p96 = scmp.ne.s32.totalorder %s88, %s90
    %p97 = scmp.eq.s32.totalorder %s17, 3
    %p98 = por %p96, %p97
    %p99 = scmp.ne.s32.totalorder %s90, %s91
    %p100 = scmp.eq.s32.totalorder %s17, 0
    %p101 = por %p99, %p100
    %p102 = scmp.ne.s32.totalorder %s90, %s91
    %p103 = scmp.eq.s32.totalorder %s18, 3
    %p104 = por %p102, %p103
    %p106 = scmp.ne.s32.totalorder %s91, %s105
    %p107 = scmp.eq.s32.totalorder %s18, 0
    %p108 = por %p106, %p107
    %s110 = sadd.s32 %s109, 1
    %p113 = scmp.eq.s32.totalorder %s12, 3
    %p114 = scmp.ne.s32.totalorder %s109, %s111
    %p115 = scmp.eq.s32.totalorder %s12, 0
    %p116 = por %p114, %p115
    %p117 = scmp.ne.s32.totalorder %s109, %s111
    %p118 = scmp.eq.s32.totalorder %s17, 3
    %p119 = por %p117, %p118
    %p120 = scmp.ne.s32.totalorder %s111, %s112
    %p121 = scmp.eq.s32.totalorder %s17, 0
    %p122 = por %p120, %p121
    %p123 = scmp.ne.s32.totalorder %s111, %s112
    %p124 = scmp.eq.s32.totalorder %s18, 3
    %p125 = por %p123, %p124
    %p127 = scmp.ne.s32.totalorder %s112, %s126
    %p128 = scmp.eq.s32.totalorder %s18, 0
    %p129 = por %p127, %p128
    %s131 = sadd.s32 %s130, 1
    %p134 = scmp.eq.s32.totalorder %s12, 3
    %p135 = scmp.ne.s32.totalorder %s130, %s132
    %p136 = scmp.eq.s32.totalorder %s12, 0
    %p137 = por %p135, %p136
    %p138 = scmp.ne.s32.totalorder %s130, %s132
    %p139 = scmp.eq.s32.totalorder %s17, 3
    %p140 = por %p138, %p139
    %p141 = scmp.ne.s32.totalorder %s132, %s133
    %p142 = scmp.eq.s32.totalorder %s17, 0
    %p143 = por %p141, %p142
    %p144 = scmp.ne.s32.totalorder %s132, %s133
    %p145 = scmp.eq.s32.totalorder %s18, 3
    %p146 = por %p144, %p145
    %p148 = scmp.ne.s32.totalorder %s133, %s147
    %p149 = scmp.eq.s32.totalorder %s18, 0
    %p150 = por %p148, %p149
    %s151 = ssub.s32 %s12, %s19
    %p152 = scmp.eq.s32.totalorder %s151, 0
    %s154 = sadd.s32 %s153, 1
    %s155 = scalar_select %p152, %s153, %s154
    %p158 = pneg %p152
    %p159 = scmp.eq.s32.totalorder %s12, 3
    %p160 = por %p158, %p159
    %p161 = scmp.ne.s32.totalorder %s153, %s156
    %p162 = scmp.eq.s32.totalorder %s12, 0
    %p163 = por %p161, %p162
    %p164 = scmp.ne.s32.totalorder %s153, %s156
    %p165 = scmp.eq.s32.totalorder %s17, 3
    %p166 = por %p164, %p165
    %p167 = scmp.ne.s32.totalorder %s156, %s157
    %p168 = scmp.eq.s32.totalorder %s17, 0
    %p169 = por %p167, %p168
    %p170 = scmp.ne.s32.totalorder %s156, %s157
    %p171 = scmp.eq.s32.totalorder %s18, 3
    %p172 = por %p170, %p171
    %p174 = scmp.ne.s32.totalorder %s157, %s173
    %p175 = scmp.eq.s32.totalorder %s18, 0
    %p176 = por %p174, %p175
    %p177 = scmp.le.s32.totalorder 1, %s12
    %p178 = scmp.lt.s32.totalorder %s12, 5
    %p179 = pnand %p177, %p178
    %p180 = pneg %p179
    // Predicated region
    $region9: #{tpu_custom_call.1} parent=5 // pred_check
      _
    $region10: #{tpu_custom_call.1} parent=5 // pred_check_branch
      %182 = sbr.rel (%p179) target = $region12
    $region11: #{tpu_custom_call.1} parent=5 // pred_region
      %s183 = ssub.s32 %s12, 1
      // Predicated region
      $region13: #{tpu_custom_call.1} parent=11 // pred_check
        %p184 = pneg %p59
      $region14: #{tpu_custom_call.1} parent=11 // pred_check_branch
        %186 = sbr.rel (%p184) target = $region16
      $region15: #{tpu_custom_call.1} parent=11 // pred_region
        _
      $region16: #{tpu_custom_call.1} parent=11 // pred_fallthru
        _
      // Predicated region
      $region17: #{tpu_custom_call.1} parent=11 // pred_check
        %p187 = pneg %p80
      $region18: #{tpu_custom_call.1} parent=11 // pred_check_branch
        %189 = sbr.rel (%p187) target = $region20
      $region19: #{tpu_custom_call.1} parent=11 // pred_region
        _
      $region20: #{tpu_custom_call.1} parent=11 // pred_fallthru
        _
      // Predicated region
      $region21: #{tpu_custom_call.1} parent=11 // pred_check
        %p190 = pneg %p101
      $region22: #{tpu_custom_call.1} parent=11 // pred_check_branch
        %192 = sbr.rel (%p190) target = $region24
      $region23: #{tpu_custom_call.1} parent=11 // pred_region
        _
      $region24: #{tpu_custom_call.1} parent=11 // pred_fallthru
        _
      // Predicated region
      $region25: #{tpu_custom_call.1} parent=11 // pred_check
        %p193 = pneg %p122
      $region26: #{tpu_custom_call.1} parent=11 // pred_check_branch
        %195 = sbr.rel (%p193) target = $region28
      $region27: #{tpu_custom_call.1} parent=11 // pred_region
        _
      $region28: #{tpu_custom_call.1} parent=11 // pred_fallthru
        _
      // Predicated region
      $region29: #{tpu_custom_call.1} parent=11 // pred_check
        %p196 = pneg %p143
      $region30: #{tpu_custom_call.1} parent=11 // pred_check_branch
        %198 = sbr.rel (%p196) target = $region32
      $region31: #{tpu_custom_call.1} parent=11 // pred_region
        _
      $region32: #{tpu_custom_call.1} parent=11 // pred_fallthru
        _
    $region12: #{tpu_custom_call.1} parent=5 // pred_fallthru
      _
    %p199 = scmp.lt.s32.totalorder %s12, 4
    // Predicated region
    $region33: #{tpu_custom_call.1} parent=5 // pred_check
      %p200 = pneg %p199
    $region34: #{tpu_custom_call.1} parent=5 // pred_check_branch
      %202 = sbr.rel (%p200) target = $region36
    $region35: #{tpu_custom_call.1} parent=5 // pred_region
      // Predicated region
      $region37: #{tpu_custom_call.1} parent=35 // pred_check
        %p203 = pneg %p32
      $region38: #{tpu_custom_call.1} parent=35 // pred_check_branch
        %205 = sbr.rel (%p203) target = $region40
      $region39: #{tpu_custom_call.1} parent=35 // pred_region
        %s206 = smul.u32 4, %s12
        %p207 = scmp.lt.s32.totalorder %s206, 15
        %s208 = scalar_select %p207, %s206, 15
        %s209 = smul.addr %s208, 8
        %s210 = scalar_lea.vmem %s0, %s209
        %s211 = smul.u32 4, %s12
      $region40: #{tpu_custom_call.1} parent=35 // pred_fallthru
        _
    $region36: #{tpu_custom_call.1} parent=5 // pred_fallthru
      _
    %p212 = scmp.le.s32.totalorder 1, %s12
    %p213 = scmp.lt.s32.totalorder %s12, 5
    %p214 = pnand %p212, %p213
    %p215 = pneg %p214
    // Predicated region
    $region41: #{tpu_custom_call.1} parent=5 // pred_check
      _
    $region42: #{tpu_custom_call.1} parent=5 // pred_check_branch
      %217 = sbr.rel (%p214) target = $region44
    $region43: #{tpu_custom_call.1} parent=5 // pred_region
      %s218 = ssub.s32 %s12, 1
      %s219 = smul.u32 4, %s17
      %p220 = scmp.lt.s32.totalorder %s219, 15
      %s221 = scalar_select %p220, %s219, 15
      %s222 = smul.addr %s221, 8
      %s223 = scalar_lea.vmem %s0, %s222
      %p224 = pneg %p38
      %p225 = pneg %p35
      %p226 = pneg %p59
      %p227 = pneg %p56
      %p228 = pneg %p80
      %p229 = pneg %p77
      %p230 = pneg %p101
      %p231 = pneg %p98
      %p232 = pneg %p122
      %p233 = pneg %p119
      %p234 = pneg %p143
      %p235 = pneg %p140
      %p236 = pneg %p169
      %p237 = pneg %p166
      %s238 = smul.u32 4, %s17
      %p239 = scmp.lt.s32.totalorder %s238, 15
      %s240 = scalar_select %p239, %s238, 15
      %s241 = smul.addr %s240, 8
      %s242 = scalar_lea.vmem %s6, %s241
      %s243 = smul.u32 4, %s17
      %p244 = scmp.lt.s32.totalorder %s243, 15
      %s245 = scalar_select %p244, %s243, 15
      %s246 = smul.addr %s245, 8
      %s247 = scalar_lea.vmem %s0, %s246
      %s248 = smul.u32 4, %s17
      %s249 = smul.u32 4, %s17
      %p250 = scmp.lt.s32.totalorder %s249, 15
      %s251 = scalar_select %p250, %s249, 15
      %s252 = smul.addr %s251, 8
      %s253 = scalar_lea.vmem %s6, %s252
      %s254 = smul.u32 4, %s17
      %v255 = vld [vmem:[%s247] sm:$0xff]
      %v256 = vld [vmem:[%s247 + $0x8] sm:$0xff]
      %v257 = vld [vmem:[%s247 + $0x10] sm:$0xff]
      %v258 = vld [vmem:[%s247 + $0x18] sm:$0xff]
      %v259 = vld [vmem:[%s1] sm:$0xff]
      %v260 = vld [vmem:[%s1 + $0x8] sm:$0xff]
      %v261 = vld [vmem:[%s1 + $0x10] sm:$0xff]
      %v262 = vld [vmem:[%s1 + $0x18] sm:$0xff]
      %vm263 = vcmask 261120
      %v265 = vsel %vm263, %v255, 0
      %v268 = vsel %vm263, %v256, 0
      %v271 = vsel %vm263, %v257, 0
      %v274 = vsel %vm263, %v258, 0
      %276 = vmatprep.subr.mxu0 0.0
      %277 = vmatpush1.msra.mxu0 %v259
      %278 = vmatprep.subr.mxu0 0.0
      %279 = vmatpush1.msra.mxu0 %v260
      %280 = vmatprep.subr.mxu0 0.0
      %281 = vmatpush1.msra.mxu0 %v261
      %282 = vmatprep.subr.mxu0 0.0
      %283 = vmatpush1.msra.mxu0 %v262
      %284 = vmatprep.subr.mxu0 0.0
      %285 = vmatpush1.msra.mxu0 0.0
      %286 = vmatprep.subr.mxu0 0.0
      %287 = vmatpush1.msra.mxu0 0.0
      %288 = vmatprep.subr.mxu0 0.0
      %289 = vmatpush1.msra.mxu0 0.0
      %290 = vmatprep.subr.mxu0 0.0
      %291 = vmatpush1.msra.mxu0 0.0
      %292 = vmatprep.subr.mxu0 0.0
      %293 = vmatpush1.msra.mxu0 0.0
      %294 = vmatprep.subr.mxu0 0.0
      %295 = vmatpush1.msra.mxu0 0.0
      %296 = vmatprep.subr.mxu0 0.0
      %297 = vmatpush1.msra.mxu0 0.0
      %298 = vmatprep.subr.mxu0 0.0
      %299 = vmatpush1.msra.mxu0 0.0
      %300 = vmatprep.subr.mxu0 0.0
      %301 = vmatpush1.msra.mxu0 0.0
      %302 = vmatprep.subr.mxu0 0.0
      %303 = vmatpush1.msra.mxu0 0.0
      %304 = vmatprep.subr.mxu0 0.0
      %305 = vmatpush1.msra.mxu0 0.0
      %306 = vmatprep.subr.mxu0 0.0
      %307 = vmatpush1.msra.mxu0 0.0
      %308 = vmatprep.subr.mxu0 0.0
      %309 = vmatpush1.msra.mxu0 0.0
      %310 = vmatprep.subr.mxu0 0.0
      %311 = vmatpush1.msra.mxu0 0.0
      %312 = vmatprep.subr.mxu0 0.0
      %313 = vmatpush1.msra.mxu0 0.0
      %314 = vmatprep.subr.mxu0 0.0
      %315 = vmatpush1.msra.mxu0 0.0
      %316 = vmatprep.subr.mxu0 0.0
      %317 = vmatpush1.msra.mxu0 0.0
      %318 = vmatprep.subr.mxu0 0.0
      %319 = vmatpush1.msra.mxu0 0.0
      %320 = vmatprep.subr.mxu0 0.0
      %321 = vmatpush1.msra.mxu0 0.0
      %322 = vmatprep.subr.mxu0 0.0
      %323 = vmatpush1.msra.mxu0 0.0
      %324 = vmatprep.subr.mxu0 0.0
      %325 = vmatpush1.msra.mxu0 0.0
      %326 = vmatprep.subr.mxu0 0.0
      %327 = vmatpush1.msra.mxu0 0.0
      %328 = vmatprep.subr.mxu0 0.0
      %329 = vmatpush1.msra.mxu0 0.0
      %330 = vmatprep.subr.mxu0 0.0
      %331 = vmatpush1.msra.mxu0 0.0
      %332 = vmatprep.subr.mxu0 0.0
      %333 = vmatpush1.msra.mxu0 0.0
      %334 = vmatprep.subr.mxu0 0.0
      %335 = vmatpush1.msra.mxu0 0.0
      %336 = vmatprep.subr.mxu0 0.0
      %337 = vmatpush1.msra.mxu0 0.0
      %338 = vmatprep.subr.mxu0 0.0
      %339 = vmatpush1.msra.mxu0 0.0
      %340 = vmatprep.mubr.f32.mxu0 0.0
      %341 = vmatmul.mubr.f32.gmra.mrb[0].mxu0 %v265
      %v342 = vpop.f32.mrb[0].mxu0
      %v343 = vadd.f32 0.0, %v342
      %v344 = vpop.f32.mrb[0].mxu0
      %345 = vmatprep.mubr.f32.mxu0 0.0
      %346 = vmatmul.mubr.f32.gmra.mrb[0].mxu0 %v268
      %v347 = vpop.f32.mrb[0].mxu0
      %v348 = vadd.f32 0.0, %v347
      %v349 = vpop.f32.mrb[0].mxu0
      %350 = vmatprep.mubr.f32.mxu0 0.0
      %351 = vmatmul.mubr.f32.gmra.mrb[0].mxu0 %v271
      %v352 = vpop.f32.mrb[0].mxu0
      %v353 = vadd.f32 0.0, %v352
      %v354 = vpop.f32.mrb[0].mxu0
      %355 = vmatprep.mubr.f32.mxu0 0.0
      %356 = vmatmul.mubr.f32.gmra.mrb[0].mxu0 %v274
      %v357 = vpop.f32.mrb[0].mxu0
      %v358 = vadd.f32 0.0, %v357
      %v359 = vpop.f32.mrb[0].mxu0
      %360 = vdwg.mxu0
      %v361 = vmul.f32 %v343, %v343
      %v362 = vmul.f32 %v348, %v348
      %v363 = vmul.f32 %v353, %v353
      %v364 = vmul.f32 %v358, %v358
      %v365 = vld [vmem:[%s2] sm:$0xff]
      %v366 = vld [vmem:[%s2 + $0x8] sm:$0xff]
      %v367 = vld [vmem:[%s2 + $0x10] sm:$0xff]
      %v368 = vld [vmem:[%s2 + $0x18] sm:$0xff]
      %v369 = vld [vmem:[%s2 + $0x20] sm:$0xff]
      %v370 = vld [vmem:[%s2 + $0x28] sm:$0xff]
      %v371 = vld [vmem:[%s2 + $0x30] sm:$0xff]
      %v372 = vld [vmem:[%s2 + $0x38] sm:$0xff]
      %v373 = vld [vmem:[%s2 + $0x40] sm:$0xff]
      %v374 = vld [vmem:[%s2 + $0x48] sm:$0xff]
      %v375 = vld [vmem:[%s2 + $0x50] sm:$0xff]
      %v376 = vld [vmem:[%s2 + $0x58] sm:$0xff]
      %v377 = vld [vmem:[%s2 + $0x60] sm:$0xff]
      %v378 = vld [vmem:[%s2 + $0x68] sm:$0xff]
      %v379 = vld [vmem:[%s2 + $0x70] sm:$0xff]
      %v380 = vld [vmem:[%s2 + $0x78] sm:$0xff]
      %381 = vmatprep.subr.mxu0 0.0
      %382 = vmatpush1.msra.mxu0 %v365
      %383 = vmatprep.subr.mxu0 0.0
      %384 = vmatpush1.msra.mxu0 %v366
      %385 = vmatprep.subr.mxu0 0.0
      %386 = vmatpush1.msra.mxu0 %v367
      %387 = vmatprep.subr.mxu0 0.0
      %388 = vmatpush1.msra.mxu0 %v368
      %389 = vmatprep.subr.mxu0 0.0
      %390 = vmatpush1.msra.mxu0 %v369
      %391 = vmatprep.subr.mxu0 0.0
      %392 = vmatpush1.msra.mxu0 %v370
      %393 = vmatprep.subr.mxu0 0.0
      %394 = vmatpush1.msra.mxu0 %v371
      %395 = vmatprep.subr.mxu0 0.0
      %396 = vmatpush1.msra.mxu0 %v372
      %397 = vmatprep.subr.mxu0 0.0
      %398 = vmatpush1.msra.mxu0 %v373
      %399 = vmatprep.subr.mxu0 0.0
      %400 = vmatpush1.msra.mxu0 %v374
      %401 = vmatprep.subr.mxu0 0.0
      %402 = vmatpush1.msra.mxu0 %v375
      %403 = vmatprep.subr.mxu0 0.0
      %404 = vmatpush1.msra.mxu0 %v376
      %405 = vmatprep.subr.mxu0 0.0
      %406 = vmatpush1.msra.mxu0 %v377
      %407 = vmatprep.subr.mxu0 0.0
      %408 = vmatpush1.msra.mxu0 %v378
      %409 = vmatprep.subr.mxu0 0.0
      %410 = vmatpush1.msra.mxu0 %v379
      %411 = vmatprep.subr.mxu0 0.0
      %412 = vmatpush1.msra.mxu0 %v380
      %413 = vmatprep.subr.mxu0 0.0
      %414 = vmatpush1.msra.mxu0 0.0
      %415 = vmatprep.subr.mxu0 0.0
      %416 = vmatpush1.msra.mxu0 0.0
      %417 = vmatprep.subr.mxu0 0.0
      %418 = vmatpush1.msra.mxu0 0.0
      %419 = vmatprep.subr.mxu0 0.0
      %420 = vmatpush1.msra.mxu0 0.0
      %421 = vmatprep.subr.mxu0 0.0
      %422 = vmatpush1.msra.mxu0 0.0
      %423 = vmatprep.subr.mxu0 0.0
      %424 = vmatpush1.msra.mxu0 0.0
      %425 = vmatprep.subr.mxu0 0.0
      %426 = vmatpush1.msra.mxu0 0.0
      %427 = vmatprep.subr.mxu0 0.0
      %428 = vmatpush1.msra.mxu0 0.0
      %429 = vmatprep.subr.mxu0 0.0
      %430 = vmatpush1.msra.mxu0 0.0
      %431 = vmatprep.subr.mxu0 0.0
      %432 = vmatpush1.msra.mxu0 0.0
      %433 = vmatprep.subr.mxu0 0.0
      %434 = vmatpush1.msra.mxu0 0.0
      %435 = vmatprep.subr.mxu0 0.0
      %436 = vmatpush1.msra.mxu0 0.0
      %437 = vmatprep.subr.mxu0 0.0
      %438 = vmatpush1.msra.mxu0 0.0
      %439 = vmatprep.subr.mxu0 0.0
      %440 = vmatpush1.msra.mxu0 0.0
      %441 = vmatprep.subr.mxu0 0.0
      %442 = vmatpush1.msra.mxu0 0.0
      %443 = vmatprep.subr.mxu0 0.0
      %444 = vmatpush1.msra.mxu0 0.0
      %445 = vmatprep.mubr.f32.mxu0 0.0
      %446 = vmatmul.mubr.f32.gmra.mrb[0].mxu0 %v361
      %v447 = vpop.f32.mrb[0].mxu0
      %v448 = vadd.f32 1e-05, %v447
      %v449 = vpop.f32.mrb[0].mxu0
      %450 = vmatprep.mubr.f32.mxu0 0.0
      %451 = vmatmul.mubr.f32.gmra.mrb[0].mxu0 %v362
      %v452 = vpop.f32.mrb[0].mxu0
      %v453 = vadd.f32 1e-05, %v452
      %v454 = vpop.f32.mrb[0].mxu0
      %455 = vmatprep.mubr.f32.mxu0 0.0
      %456 = vmatmul.mubr.f32.gmra.mrb[0].mxu0 %v363
      %v457 = vpop.f32.mrb[0].mxu0
      %v458 = vadd.f32 1e-05, %v457
      %v459 = vpop.f32.mrb[0].mxu0
      %460 = vmatprep.mubr.f32.mxu0 0.0
      %461 = vmatmul.mubr.f32.gmra.mrb[0].mxu0 %v364
      %v462 = vpop.f32.mrb[0].mxu0
      %v463 = vadd.f32 1e-05, %v462
      %v464 = vpop.f32.mrb[0].mxu0
      %465 = vdwg.mxu0
      %v466 = vrsqrt.pop %v448
      %v467 = vrsqrt.pop %v453
      %v468 = vrsqrt.pop %v458
      %v469 = vrsqrt.pop %v463
      %v470 = vld [vmem:[%s4] sm:$0xff]
      %v471 = vld [vmem:[%s4 + $0x8] sm:$0xff]
      %v472 = vld [vmem:[%s4 + $0x10] sm:$0xff]
      %v473 = vld [vmem:[%s4 + $0x18] sm:$0xff]
      %v474 = vld [vmem:[%s4 + $0x20] sm:$0xff]
      %v475 = vld [vmem:[%s4 + $0x28] sm:$0xff]
      %v476 = vld [vmem:[%s4 + $0x30] sm:$0xff]
      %v477 = vld [vmem:[%s4 + $0x38] sm:$0xff]
      %v478 = vld [vmem:[%s4 + $0x40] sm:$0xff]
      %v479 = vld [vmem:[%s4 + $0x48] sm:$0xff]
      %v480 = vld [vmem:[%s4 + $0x50] sm:$0xff]
      %v481 = vld [vmem:[%s4 + $0x58] sm:$0xff]
      %v482 = vld [vmem:[%s4 + $0x60] sm:$0xff]
      %v483 = vld [vmem:[%s4 + $0x68] sm:$0xff]
      %v484 = vld [vmem:[%s4 + $0x70] sm:$0xff]
      %v485 = vld [vmem:[%s4 + $0x78] sm:$0xff]
      %486 = vmatprep.subr.mxu0 0.0
      %487 = vmatpush1.msra.mxu0 %v470
      %488 = vmatprep.subr.mxu0 0.0
      %489 = vmatpush1.msra.mxu0 %v471
      %490 = vmatprep.subr.mxu0 0.0
      %491 = vmatpush1.msra.mxu0 %v472
      %492 = vmatprep.subr.mxu0 0.0
      %493 = vmatpush1.msra.mxu0 %v473
      %494 = vmatprep.subr.mxu0 0.0
      %495 = vmatpush1.msra.mxu0 %v474
      %496 = vmatprep.subr.mxu0 0.0
      %497 = vmatpush1.msra.mxu0 %v475
      %498 = vmatprep.subr.mxu0 0.0
      %499 = vmatpush1.msra.mxu0 %v476
      %500 = vmatprep.subr.mxu0 0.0
      %501 = vmatpush1.msra.mxu0 %v477
      %502 = vmatprep.subr.mxu0 0.0
      %503 = vmatpush1.msra.mxu0 %v478
      %504 = vmatprep.subr.mxu0 0.0
      %505 = vmatpush1.msra.mxu0 %v479
      %506 = vmatprep.subr.mxu0 0.0
      %507 = vmatpush1.msra.mxu0 %v480
      %508 = vmatprep.subr.mxu0 0.0
      %509 = vmatpush1.msra.mxu0 %v481
      %510 = vmatprep.subr.mxu0 0.0
      %511 = vmatpush1.msra.mxu0 %v482
      %512 = vmatprep.subr.mxu0 0.0
      %513 = vmatpush1.msra.mxu0 %v483
      %514 = vmatprep.subr.mxu0 0.0
      %515 = vmatpush1.msra.mxu0 %v484
      %516 = vmatprep.subr.mxu0 0.0
      %517 = vmatpush1.msra.mxu0 %v485
      %518 = vmatprep.subr.mxu0 0.0
      %519 = vmatpush1.msra.mxu0 0.0
      %520 = vmatprep.subr.mxu0 0.0
      %521 = vmatpush1.msra.mxu0 0.0
      %522 = vmatprep.subr.mxu0 0.0
      %523 = vmatpush1.msra.mxu0 0.0
      %524 = vmatprep.subr.mxu0 0.0
      %525 = vmatpush1.msra.mxu0 0.0
      %526 = vmatprep.subr.mxu0 0.0
      %527 = vmatpush1.msra.mxu0 0.0
      %528 = vmatprep.subr.mxu0 0.0
      %529 = vmatpush1.msra.mxu0 0.0
      %530 = vmatprep.subr.mxu0 0.0
      %531 = vmatpush1.msra.mxu0 0.0
      %532 = vmatprep.subr.mxu0 0.0
      %533 = vmatpush1.msra.mxu0 0.0
      %534 = vmatprep.subr.mxu0 0.0
      %535 = vmatpush1.msra.mxu0 0.0
      %536 = vmatprep.subr.mxu0 0.0
      %537 = vmatpush1.msra.mxu0 0.0
      %538 = vmatprep.subr.mxu0 0.0
      %539 = vmatpush1.msra.mxu0 0.0
      %540 = vmatprep.subr.mxu0 0.0
      %541 = vmatpush1.msra.mxu0 0.0
      %542 = vmatprep.subr.mxu0 0.0
      %543 = vmatpush1.msra.mxu0 0.0
      %544 = vmatprep.subr.mxu0 0.0
      %545 = vmatpush1.msra.mxu0 0.0
      %546 = vmatprep.subr.mxu0 0.0
      %547 = vmatpush1.msra.mxu0 0.0
      %548 = vmatprep.subr.mxu0 0.0
      %549 = vmatpush1.msra.mxu0 0.0
      %550 = vmatprep.mubr.f32.mxu0 0.0
      %551 = vmatmul.mubr.f32.gmra.mrb[0].mxu0 %v343
      %v552 = vpop.f32.mrb[0].mxu0
      %v553 = vadd.f32 0.0, %v552
      %v554 = vpop.f32.mrb[0].mxu0
      %555 = vmatprep.mubr.f32.mxu0 0.0
      %556 = vmatmul.mubr.f32.gmra.mrb[0].mxu0 %v348
      %v557 = vpop.f32.mrb[0].mxu0
      %v558 = vadd.f32 0.0, %v557
      %v559 = vpop.f32.mrb[0].mxu0
      %560 = vmatprep.mubr.f32.mxu0 0.0
      %561 = vmatmul.mubr.f32.gmra.mrb[0].mxu0 %v353
      %v562 = vpop.f32.mrb[0].mxu0
      %v563 = vadd.f32 0.0, %v562
      %v564 = vpop.f32.mrb[0].mxu0
      %565 = vmatprep.mubr.f32.mxu0 0.0
      %566 = vmatmul.mubr.f32.gmra.mrb[0].mxu0 %v358
      %v567 = vpop.f32.mrb[0].mxu0
      %v568 = vadd.f32 0.0, %v567
      %v569 = vpop.f32.mrb[0].mxu0
      %570 = vdwg.mxu0
      %v571 = vld [vmem:[%s3] sm:$0xf]
      %vm572 = vcmask 31744
      %v574 = vsel %vm572, %v466, 0
      %v577 = vsel %vm572, %v467, 0
      %v580 = vsel %vm572, %v468, 0
      %v583 = vsel %vm572, %v469, 0
      %vm585 = vcmask 1043456
      %v587 = vsel %vm585, %v571, 0
      %589 = vmatprep.subr.mxu0 0.0
      %590 = vmatpush1.msra.mxu0 %v587
      %591 = vmatprep.subr.mxu0 0.0
      %592 = vmatpush1.msra.mxu0 0.0
      %593 = vmatprep.subr.mxu0 0.0
      %594 = vmatpush1.msra.mxu0 0.0
      %595 = vmatprep.subr.mxu0 0.0
      %596 = vmatpush1.msra.mxu0 0.0
      %597 = vmatprep.subr.mxu0 0.0
      %598 = vmatpush1.msra.mxu0 0.0
      %599 = vmatprep.subr.mxu0 0.0
      %600 = vmatpush1.msra.mxu0 0.0
      %601 = vmatprep.subr.mxu0 0.0
      %602 = vmatpush1.msra.mxu0 0.0
      %603 = vmatprep.subr.mxu0 0.0
      %604 = vmatpush1.msra.mxu0 0.0
      %605 = vmatprep.subr.mxu0 0.0
      %606 = vmatpush1.msra.mxu0 0.0
      %607 = vmatprep.subr.mxu0 0.0
      %608 = vmatpush1.msra.mxu0 0.0
      %609 = vmatprep.subr.mxu0 0.0
      %610 = vmatpush1.msra.mxu0 0.0
      %611 = vmatprep.subr.mxu0 0.0
      %612 = vmatpush1.msra.mxu0 0.0
      %613 = vmatprep.subr.mxu0 0.0
      %614 = vmatpush1.msra.mxu0 0.0
      %615 = vmatprep.subr.mxu0 0.0
      %616 = vmatpush1.msra.mxu0 0.0
      %617 = vmatprep.subr.mxu0 0.0
      %618 = vmatpush1.msra.mxu0 0.0
      %619 = vmatprep.subr.mxu0 0.0
      %620 = vmatpush1.msra.mxu0 0.0
      %621 = vmatprep.subr.mxu0 0.0
      %622 = vmatpush1.msra.mxu0 0.0
      %623 = vmatprep.subr.mxu0 0.0
      %624 = vmatpush1.msra.mxu0 0.0
      %625 = vmatprep.subr.mxu0 0.0
      %626 = vmatpush1.msra.mxu0 0.0
      %627 = vmatprep.subr.mxu0 0.0
      %628 = vmatpush1.msra.mxu0 0.0
      %629 = vmatprep.subr.mxu0 0.0
      %630 = vmatpush1.msra.mxu0 0.0
      %631 = vmatprep.subr.mxu0 0.0
      %632 = vmatpush1.msra.mxu0 0.0
      %633 = vmatprep.subr.mxu0 0.0
      %634 = vmatpush1.msra.mxu0 0.0
      %635 = vmatprep.subr.mxu0 0.0
      %636 = vmatpush1.msra.mxu0 0.0
      %637 = vmatprep.subr.mxu0 0.0
      %638 = vmatpush1.msra.mxu0 0.0
      %639 = vmatprep.subr.mxu0 0.0
      %640 = vmatpush1.msra.mxu0 0.0
      %641 = vmatprep.subr.mxu0 0.0
      %642 = vmatpush1.msra.mxu0 0.0
      %643 = vmatprep.subr.mxu0 0.0
      %644 = vmatpush1.msra.mxu0 0.0
      %645 = vmatprep.subr.mxu0 0.0
      %646 = vmatpush1.msra.mxu0 0.0
      %647 = vmatprep.subr.mxu0 0.0
      %648 = vmatpush1.msra.mxu0 0.0
      %649 = vmatprep.subr.mxu0 0.0
      %650 = vmatpush1.msra.mxu0 0.0
      %651 = vmatprep.subr.mxu0 0.0
      %652 = vmatpush1.msra.mxu0 0.0
      %653 = vmatprep.mubr.f32.mxu0 0.0
      %654 = vmatmul.mubr.f32.gmra.mrb[0].mxu0 %v574
      %v655 = vpop.f32.mrb[0].mxu0
      %v656 = vadd.f32 0.0, %v655
      %v657 = vpop.f32.mrb[0].mxu0
      %658 = vmatprep.mubr.f32.mxu0 0.0
      %659 = vmatmul.mubr.f32.gmra.mrb[0].mxu0 %v577
      %v660 = vpop.f32.mrb[0].mxu0
      %v661 = vadd.f32 0.0, %v660
      %v662 = vpop.f32.mrb[0].mxu0
      %663 = vmatprep.mubr.f32.mxu0 0.0
      %664 = vmatmul.mubr.f32.gmra.mrb[0].mxu0 %v580
      %v665 = vpop.f32.mrb[0].mxu0
      %v666 = vadd.f32 0.0, %v665
      %v667 = vpop.f32.mrb[0].mxu0
      %668 = vmatprep.mubr.f32.mxu0 0.0
      %669 = vmatmul.mubr.f32.gmra.mrb[0].mxu0 %v583
      %v670 = vpop.f32.mrb[0].mxu0
      %v671 = vadd.f32 0.0, %v670
      %v672 = vpop.f32.mrb[0].mxu0
      %673 = vdwg.mxu0
      %v674 = vmul.f32 %v553, %v656
      %v675 = vmul.f32 %v558, %v661
      %v676 = vmul.f32 %v563, %v666
      %v677 = vmul.f32 %v568, %v671
      %v678 = vld [vmem:[%s5] sm:$0x1]
      %v680 = vlaneseq
      %v681 = vshrl.u32 %v680, 7
      %v682 = vsub.s32 0, %v681
      %v683 = vrot.slane %v678, %v682
      %v685 = vadd.f32 %v674, %v683
      %v686 = vadd.f32 %v675, %v683
      %v687 = vadd.f32 %v676, %v683
      %v688 = vadd.f32 %v677, %v683
      %vm689 = vcmask 130048
      %690 = vst.msk [vmem:[%s253] sm:$0xff] %vm689, %v685
      %691 = vst.msk [vmem:[%s253 + $0x8] sm:$0xff] %vm689, %v686
      %692 = vst.msk [vmem:[%s253 + $0x10] sm:$0xff] %vm689, %v687
      %693 = vst.msk [vmem:[%s253 + $0x18] sm:$0xff] %vm689, %v688
      %s694 = smul.u32 4, %s17
      %p695 = scmp.lt.s32.totalorder %s694, 15
      %s696 = scalar_select %p695, %s694, 15
      %s697 = smul.addr %s696, 8
      %s698 = scalar_lea.vmem %s6, %s697
      // Predicated region
      $region45: #{tpu_custom_call.1} parent=43 // pred_check
        %p699 = pneg %p166
      $region46: #{tpu_custom_call.1} parent=43 // pred_check_branch
        %701 = sbr.rel (%p699) target = $region48
      $region47: #{tpu_custom_call.1} parent=43 // pred_region
        %s702 = smul.u32 4, %s17
      $region48: #{tpu_custom_call.1} parent=43 // pred_fallthru
        _
    $region44: #{tpu_custom_call.1} parent=5 // pred_fallthru
      _
    %p703 = scmp.le.s32.totalorder 2, %s12
    // Predicated region
    $region49: #{tpu_custom_call.1} parent=5 // pred_check
      %p704 = pneg %p703
    $region50: #{tpu_custom_call.1} parent=5 // pred_check_branch
      %706 = sbr.rel (%p704) target = $region52
    $region51: #{tpu_custom_call.1} parent=5 // pred_region
      %s707 = ssub.s32 %s12, 2
      // Predicated region
      $region53: #{tpu_custom_call.1} parent=51 // pred_check
        %p708 = pneg %p172
      $region54: #{tpu_custom_call.1} parent=51 // pred_check_branch
        %710 = sbr.rel (%p708) target = $region56
      $region55: #{tpu_custom_call.1} parent=51 // pred_region
        %s711 = smul.u32 4, %s18
        %p712 = scmp.lt.s32.totalorder %s711, 15
        %s713 = scalar_select %p712, %s711, 15
        %s714 = smul.addr %s713, 8
        %s715 = scalar_lea.vmem %s6, %s714
      $region56: #{tpu_custom_call.1} parent=51 // pred_fallthru
        _
    $region52: #{tpu_custom_call.1} parent=5 // pred_fallthru
      _
  $region6: #{tpu_custom_call.1} parent=0 // loop_footer
    %s16 = sadd.s32 1, %s12
  $region7: #{tpu_custom_call.1} parent=0 // loop_footer_branch
    %11 = sbr.rel target = $region3
  $region8: #{tpu_custom_call.1} parent=0 // loop_exit
    _

</llo_original>
